<compile_context>
chip_gen: v6e
topology: v6e:2x2x1
jax: 0.10.0
libtpu: 0.0.40
codegen_flags: <defaults>
</compile_context>

<pallas_src>
import functools
import math

import jax
import jax.numpy as jnp
import numpy as np
from jax.experimental import pallas as pl
from jax.experimental.pallas import tpu as pltpu

_LANE = 128


def _round_up(x, m):
    return (x + m - 1) // m * m


def _cdiv(a, b):
    return -(-a // b)


def _vmem_capacity_bytes():
    try:
        return int(pltpu.get_tpu_info().vmem_capacity_bytes)
    except Exception:
        return 64 * 1024 * 1024  # conservative fallback (v7x per-core VMEM)


def _plan(bg, rowlen, itemsize, max_lanes_override=None):
    """Pick lane-tile size, split count, mask flag and VMEM limit."""
    pack = max(1, 4 // max(1, itemsize))           # sublane packing of the input dtype
    rows_pad = _round_up(bg, 8 * pack)             # sublane-padded rows of one tile
    vmem_cap = _vmem_capacity_bytes()
    # Budget for the pipelined input tiles: 2 inputs x 2 pipeline buffers.
    budget = min(vmem_cap // 3, 48 * 1024 * 1024)
    per_lane = 2 * 2 * itemsize * rows_pad
    max_lanes = max(_LANE, (budget // per_lane) // _LANE * _LANE)
    if max_lanes_override is not None:
        max_lanes = int(max_lanes_override)
    if rowlen <= max_lanes:
        d_tile, total_tiles = rowlen, 1            # full-row block (128-divisibility not needed)
    else:
        d_tile = int(max_lanes)                    # multiple of 128
        total_tiles = _cdiv(rowlen, d_tile)
    # Split the reduction axis over a leading "parallel" grid axis (v7x: 2 TensorCores).
    n_split = 2 if total_tiles >= 8 else 1
    tiles_per_split = _cdiv(total_tiles, n_split)
    masked = (n_split * tiles_per_split * d_tile != rowlen)
    vmem_limit = int(min(vmem_cap // 2, 64 * 1024 * 1024))
    return d_tile, total_tiles, n_split, tiles_per_split, masked, vmem_limit


def _kl2_kernel(x_ref, y_ref, mx_ref, sx_ref, t_ref, my_ref, sy_ref,
                *, rowlen, d_tile, tiles_per_split, masked):
    i = pl.program_id(1)                 # tile index along the (folded) feature axis

    @pl.when(i == 0)
    def _init():
        mx_ref[...] = jnp.full_like(mx_ref, -jnp.inf)
        my_ref[...] = jnp.full_like(my_ref, -jnp.inf)
        sx_ref[...] = jnp.zeros_like(sx_ref)
        sy_ref[...] = jnp.zeros_like(sy_ref)
        t_ref[...] = jnp.zeros_like(t_ref)

    # Stream native dtype; promote in-VMEM (free on the VPU, halves HBM bytes for bf16).
    x = x_ref[...].astype(jnp.float32)   # (rows, d_tile)
    y = y_ref[...].astype(jnp.float32)

    if masked:
        start = (pl.program_id(0) * tiles_per_split + i) * d_tile
        lane = jax.lax.broadcasted_iota(jnp.int32, x.shape, 1)
        valid = (lane + start) < rowlen
        neg = jnp.float32(-1e30)
        x_for_max = jnp.where(valid, x, neg)
        y_for_max = jnp.where(valid, y, neg)
    else:
        x_for_max, y_for_max = x, y

    # --- preds branch: online softmax normalizer + weighted (x - y) term ---
    m_old = mx_ref[0]                                    # (rows, 1)
    mxn = jnp.maximum(m_old, jnp.max(x_for_max, axis=1, keepdims=True))
    ax = jnp.exp(m_old - mxn)
    ex = jnp.exp(x - mxn)
    txy = ex * (x - y)
    if masked:
        ex = jnp.where(valid, ex, 0.0)
        txy = jnp.where(valid, txy, 0.0)
    sx_ref[0] = ax * sx_ref[0] + jnp.sum(ex, axis=1, keepdims=True)
    t_ref[0] = ax * t_ref[0] + jnp.sum(txy, axis=1, keepdims=True)
    mx_ref[0] = mxn

    # --- target branch: online softmax normalizer only ---
    m_old = my_ref[0]
    myn = jnp.maximum(m_old, jnp.max(y_for_max, axis=1, keepdims=True))
    ay = jnp.exp(m_old - myn)
    ey = jnp.exp(y - myn)
    if masked:
        ey = jnp.where(valid, ey, 0.0)
    sy_ref[0] = ay * sy_ref[0] + jnp.sum(ey, axis=1, keepdims=True)
    my_ref[0] = myn


def criterion_kl2(preds, target, *, max_lanes_override=None):
    assert preds.shape == target.shape
    b = preds.shape[0]
    d = math.prod(preds.shape[1:])
    itemsize = jnp.dtype(preds.dtype).itemsize

    # Sub-lane fold: view each batch row as g contiguous sub-rows so the tile fills the
    # vreg sublanes (8 rows for 32-bit, 16 for 16-bit inputs) even when b is tiny.
    pack = max(1, 4 // max(1, itemsize))
    target_rows = 8 * pack
    g = 1
    if b < target_rows:
        g = target_rows // b
        while g > 1 and d % g != 0:
            g //= 2
    bg = b * g
    rowlen = d // g

    x = preds.reshape(bg, rowlen)    # contiguous row-major reshape: no data movement
    y = target.reshape(bg, rowlen)

    (d_tile, total_tiles, n_split, tiles_per_split, masked,
     vmem_limit) = _plan(bg, rowlen, itemsize, max_lanes_override)
    max_block = total_tiles - 1

    def lane_idx(s, i):
        # Clamp so a fully out-of-range trailing block re-reads the last real block; its
        # contribution is zeroed by the in-kernel mask.
        return (0, jnp.minimum(s * tiles_per_split + i, max_block))

    kernel = functools.partial(_kl2_kernel, rowlen=rowlen, d_tile=d_tile,
                               tiles_per_split=tiles_per_split, masked=masked)

    stat = jax.ShapeDtypeStruct((n_split, bg, 1), jnp.float32)
    stat_spec = pl.BlockSpec((1, bg, 1), lambda s, i: (s, 0, 0))

    mx, sx, tt, my, sy = pl.pallas_call(
        kernel,
        out_shape=(stat,) * 5,
        grid_spec=pltpu.PrefetchScalarGridSpec(
            num_scalar_prefetch=0,
            grid=(n_split, tiles_per_split),
            in_specs=[pl.BlockSpec((bg, d_tile), lane_idx),   # preds logits (native dtype)
                      pl.BlockSpec((bg, d_tile), lane_idx)],  # target logits (native dtype)
            out_specs=(stat_spec,) * 5,
        ),
        compiler_params=pltpu.CompilerParams(
            dimension_semantics=("parallel", "arbitrary"),
            vmem_limit_bytes=vmem_limit,
        ),
    )(x, y)

    # Merge the (n_split * g) online-softmax partials per batch row (tiny, plain JAX).
    mx = mx.reshape(n_split, b, g)
    sx = sx.reshape(n_split, b, g)
    tt = tt.reshape(n_split, b, g)
    my = my.reshape(n_split, b, g)
    sy = sy.reshape(n_split, b, g)

    m_x = jnp.max(mx, axis=(0, 2))                         # (b,)
    wx = jnp.exp(mx - m_x[None, :, None])
    s_x = jnp.sum(sx * wx, axis=(0, 2))
    t_x = jnp.sum(tt * wx, axis=(0, 2))
    m_y = jnp.max(my, axis=(0, 2))
    wy = jnp.exp(my - m_y[None, :, None])
    s_y = jnp.sum(sy * wy, axis=(0, 2))

    lse_x = m_x + jnp.log(s_x)
    lse_y = m_y + jnp.log(s_y)
    per_b = t_x / s_x - lse_x + lse_y                      # per-batch-row KL
    return jnp.sum(per_b) / b


def _reference(preds, target):
    # Pure-JAX mirror of the PyTorch forward: softmax over the flattened per-batch row,
    # then sum(p * log(p / q)) / b.
    b = preds.shape[0]
    x = preds.reshape(b, -1).astype(jnp.float32)
    y = target.reshape(b, -1).astype(jnp.float32)
    p = jax.nn.softmax(x, axis=1)
    q = jax.nn.softmax(y, axis=1)
    return jnp.sum(p * jnp.log(p / q)) / b


if __name__ == "__main__":
    key = jax.random.PRNGKey(0)
    k1, k2, k3, k4 = jax.random.split(key, 4)

    # Primary case: matches the PyTorch module's (b, c, h, w) inputs.
    preds = jax.random.normal(k1, (2, 4, 16, 16), dtype=jnp.float32)
    target = jax.random.normal(k2, (2, 4, 16, 16), dtype=jnp.float32)
    loss = jax.jit(criterion_kl2)(preds, target)
    jax.block_until_ready(loss)
    np.testing.assert_allclose(np.asarray(loss), np.asarray(_reference(preds, target)),
                               rtol=1e-2, atol=1e-3)

    # Native bf16 streaming path (in-kernel f32 promotion).
    p_bf16 = preds.astype(jnp.bfloat16)
    t_bf16 = target.astype(jnp.bfloat16)
    loss_bf16 = jax.jit(criterion_kl2)(p_bf16, t_bf16)
    jax.block_until_ready(loss_bf16)
    np.testing.assert_allclose(np.asarray(loss_bf16),
                               np.asarray(_reference(p_bf16, t_bf16)),
                               rtol=1e-2, atol=1e-3)

    # Ragged / multi-tile / 2-way-split / masked path (tile size forced small to exercise
    # the cdiv over-cover, the in-kernel mask and the clamped trailing block).
    preds3 = jax.random.normal(k3, (2, 4, 32, 35), dtype=jnp.float32)
    target3 = jax.random.normal(k4, (2, 4, 32, 35), dtype=jnp.float32)
    small_tile = jax.jit(functools.partial(criterion_kl2, max_lanes_override=128))
    loss3 = small_tile(preds3, target3)
    jax.block_until_ready(loss3)
    np.testing.assert_allclose(np.asarray(loss3), np.asarray(_reference(preds3, target3)),
                               rtol=1e-2, atol=1e-3)

    print("KERNEL_OK")
</pallas_src>

<mosaic_0001>
module attributes {stable_mosaic.version = 11 : i64} {
  func.func @_kl2_kernel(%arg0: i32, %arg1: i32, %arg2: memref<8x256xf32, #tpu.memory_space<vmem>>, %arg3: memref<8x256xf32, #tpu.memory_space<vmem>>, %arg4: memref<1x8x1xf32, #tpu.memory_space<vmem>>, %arg5: memref<1x8x1xf32, #tpu.memory_space<vmem>>, %arg6: memref<1x8x1xf32, #tpu.memory_space<vmem>>, %arg7: memref<1x8x1xf32, #tpu.memory_space<vmem>>, %arg8: memref<1x8x1xf32, #tpu.memory_space<vmem>>) attributes {dimension_semantics = [#tpu.dimension_semantics<parallel>, #tpu.dimension_semantics<arbitrary>], iteration_bounds = array<i64: 1, 1>, scalar_prefetch = 0 : i64, scratch_operands = 0 : i64, tpu.core_type = #tpu.core_type<tc>, window_params = [{transform_indices = @transform_0, window_bounds = array<i64: 8, 256>}, {transform_indices = @transform_1, window_bounds = array<i64: 8, 256>}, {transform_indices = @transform_2, window_bounds = array<i64: 1, 8, 1>}, {transform_indices = @transform_3, window_bounds = array<i64: 1, 8, 1>}, {transform_indices = @transform_4, window_bounds = array<i64: 1, 8, 1>}, {transform_indices = @transform_5, window_bounds = array<i64: 1, 8, 1>}, {transform_indices = @transform_6, window_bounds = array<i64: 1, 8, 1>}]} {
    %c0_i32 = arith.constant 0 : i32
    %0 = arith.cmpi eq, %arg1, %c0_i32 : i32
    %1 = arith.extui %0 : i1 to i32
    %c0_i32_0 = arith.constant 0 : i32
    %2 = arith.cmpi ne, %1, %c0_i32_0 : i32
    scf.if %2 {
      %cst_38 = arith.constant 0xFF800000 : f32
      %60 = vector.broadcast %cst_38 : f32 to vector<1x8x1xf32>
      %c0_39 = arith.constant 0 : index
      %c0_40 = arith.constant 0 : index
      %c0_41 = arith.constant 0 : index
      %61 = vector.load %arg4[%c0_39, %c0_40, %c0_41] : memref<1x8x1xf32, #tpu.memory_space<vmem>>, vector<1x8x1xf32>
      tpu.vector_store %arg4[%c0_39, %c0_40, %c0_41], %60 {strides = array<i32>} : memref<1x8x1xf32, #tpu.memory_space<vmem>>, vector<1x8x1xf32>,
      %cst_42 = arith.constant 0xFF800000 : f32
      %62 = vector.broadcast %cst_42 : f32 to vector<1x8x1xf32>
      %c0_43 = arith.constant 0 : index
      %c0_44 = arith.constant 0 : index
      %c0_45 = arith.constant 0 : index
      %63 = vector.load %arg7[%c0_43, %c0_44, %c0_45] : memref<1x8x1xf32, #tpu.memory_space<vmem>>, vector<1x8x1xf32>
      tpu.vector_store %arg7[%c0_43, %c0_44, %c0_45], %62 {strides = array<i32>} : memref<1x8x1xf32, #tpu.memory_space<vmem>>, vector<1x8x1xf32>,
      %cst_46 = arith.constant 0.000000e+00 : f32
      %64 = vector.broadcast %cst_46 : f32 to vector<1x8x1xf32>
      %c0_47 = arith.constant 0 : index
      %c0_48 = arith.constant 0 : index
      %c0_49 = arith.constant 0 : index
      %65 = vector.load %arg5[%c0_47, %c0_48, %c0_49] : memref<1x8x1xf32, #tpu.memory_space<vmem>>, vector<1x8x1xf32>
      tpu.vector_store %arg5[%c0_47, %c0_48, %c0_49], %64 {strides = array<i32>} : memref<1x8x1xf32, #tpu.memory_space<vmem>>, vector<1x8x1xf32>,
      %cst_50 = arith.constant 0.000000e+00 : f32
      %66 = vector.broadcast %cst_50 : f32 to vector<1x8x1xf32>
      %c0_51 = arith.constant 0 : index
      %c0_52 = arith.constant 0 : index
      %c0_53 = arith.constant 0 : index
      %67 = vector.load %arg8[%c0_51, %c0_52, %c0_53] : memref<1x8x1xf32, #tpu.memory_space<vmem>>, vector<1x8x1xf32>
      tpu.vector_store %arg8[%c0_51, %c0_52, %c0_53], %66 {strides = array<i32>} : memref<1x8x1xf32, #tpu.memory_space<vmem>>, vector<1x8x1xf32>,
      %cst_54 = arith.constant 0.000000e+00 : f32
      %68 = vector.broadcast %cst_54 : f32 to vector<1x8x1xf32>
      %c0_55 = arith.constant 0 : index
      %c0_56 = arith.constant 0 : index
      %c0_57 = arith.constant 0 : index
      %69 = vector.load %arg6[%c0_55, %c0_56, %c0_57] : memref<1x8x1xf32, #tpu.memory_space<vmem>>, vector<1x8x1xf32>
      tpu.vector_store %arg6[%c0_55, %c0_56, %c0_57], %68 {strides = array<i32>} : memref<1x8x1xf32, #tpu.memory_space<vmem>>, vector<1x8x1xf32>,
    } else {
    }
    %c0 = arith.constant 0 : index
    %c0_1 = arith.constant 0 : index
    %3 = vector.load %arg2[%c0, %c0_1] : memref<8x256xf32, #tpu.memory_space<vmem>>, vector<8x256xf32>
    %c0_2 = arith.constant 0 : index
    %c0_3 = arith.constant 0 : index
    %4 = vector.load %arg3[%c0_2, %c0_3] : memref<8x256xf32, #tpu.memory_space<vmem>>, vector<8x256xf32>
    %c0_4 = arith.constant 0 : index
    %c0_5 = arith.constant 0 : index
    %c0_6 = arith.constant 0 : index
    %5 = vector.load %arg4[%c0_4, %c0_5, %c0_6] : memref<1x8x1xf32, #tpu.memory_space<vmem>>, vector<1x8x1xf32>
    %6 = vector.shape_cast %5 : vector<1x8x1xf32> to vector<8x1xf32>
    %cst = arith.constant dense<0xFF800000> : vector<8xf32>
    %7 = vector.multi_reduction <maximumf>, %3, %cst [1] : vector<8x256xf32> to vector<8xf32>
    %8 = vector.shape_cast %7 : vector<8xf32> to vector<8x1xf32>
    %9 = arith.maximumf %6, %8 : vector<8x1xf32>
    %10 = arith.subf %6, %9 : vector<8x1xf32>
    %11 = math.exp %10 : vector<8x1xf32>
    %12 = vector.broadcast %9 : vector<8x1xf32> to vector<8x256xf32>
    %13 = arith.subf %3, %12 : vector<8x256xf32>
    %14 = math.exp %13 : vector<8x256xf32>
    %15 = arith.subf %3, %4 : vector<8x256xf32>
    %16 = arith.mulf %14, %15 : vector<8x256xf32>
    %c0_7 = arith.constant 0 : index
    %c0_8 = arith.constant 0 : index
    %c0_9 = arith.constant 0 : index
    %17 = vector.load %arg5[%c0_7, %c0_8, %c0_9] : memref<1x8x1xf32, #tpu.memory_space<vmem>>, vector<1x8x1xf32>
    %18 = vector.shape_cast %17 : vector<1x8x1xf32> to vector<8x1xf32>
    %19 = arith.mulf %11, %18 : vector<8x1xf32>
    %cst_10 = arith.constant dense<0.000000e+00> : vector<8xf32>
    %20 = vector.multi_reduction <add>, %14, %cst_10 [1] : vector<8x256xf32> to vector<8xf32>
    %21 = vector.shape_cast %20 : vector<8xf32> to vector<8x1xf32>
    %22 = arith.addf %19, %21 : vector<8x1xf32>
    %c0_11 = arith.constant 0 : index
    %c0_12 = arith.constant 0 : index
    %c0_13 = arith.constant 0 : index
    %23 = vector.load %arg5[%c0_11, %c0_12, %c0_13] : memref<1x8x1xf32, #tpu.memory_space<vmem>>, vector<1x8x1xf32>
    %24 = vector.shape_cast %23 : vector<1x8x1xf32> to vector<8x1xf32>
    %25 = vector.shape_cast %22 : vector<8x1xf32> to vector<1x8x1xf32>
    tpu.vector_store %arg5[%c0_11, %c0_12, %c0_13], %25 {strides = array<i32>} : memref<1x8x1xf32, #tpu.memory_space<vmem>>, vector<1x8x1xf32>,
    %c0_14 = arith.constant 0 : index
    %c0_15 = arith.constant 0 : index
    %c0_16 = arith.constant 0 : index
    %26 = vector.load %arg6[%c0_14, %c0_15, %c0_16] : memref<1x8x1xf32, #tpu.memory_space<vmem>>, vector<1x8x1xf32>
    %27 = vector.shape_cast %26 : vector<1x8x1xf32> to vector<8x1xf32>
    %28 = arith.mulf %11, %27 : vector<8x1xf32>
    %cst_17 = arith.constant dense<0.000000e+00> : vector<8xf32>
    %29 = vector.multi_reduction <add>, %16, %cst_17 [1] : vector<8x256xf32> to vector<8xf32>
    %30 = vector.shape_cast %29 : vector<8xf32> to vector<8x1xf32>
    %31 = arith.addf %28, %30 : vector<8x1xf32>
    %c0_18 = arith.constant 0 : index
    %c0_19 = arith.constant 0 : index
    %c0_20 = arith.constant 0 : index
    %32 = vector.load %arg6[%c0_18, %c0_19, %c0_20] : memref<1x8x1xf32, #tpu.memory_space<vmem>>, vector<1x8x1xf32>
    %33 = vector.shape_cast %32 : vector<1x8x1xf32> to vector<8x1xf32>
    %34 = vector.shape_cast %31 : vector<8x1xf32> to vector<1x8x1xf32>
    tpu.vector_store %arg6[%c0_18, %c0_19, %c0_20], %34 {strides = array<i32>} : memref<1x8x1xf32, #tpu.memory_space<vmem>>, vector<1x8x1xf32>,
    %c0_21 = arith.constant 0 : index
    %c0_22 = arith.constant 0 : index
    %c0_23 = arith.constant 0 : index
    %35 = vector.load %arg4[%c0_21, %c0_22, %c0_23] : memref<1x8x1xf32, #tpu.memory_space<vmem>>, vector<1x8x1xf32>
    %36 = vector.shape_cast %35 : vector<1x8x1xf32> to vector<8x1xf32>
    %37 = vector.shape_cast %9 : vector<8x1xf32> to vector<1x8x1xf32>
    tpu.vector_store %arg4[%c0_21, %c0_22, %c0_23], %37 {strides = array<i32>} : memref<1x8x1xf32, #tpu.memory_space<vmem>>, vector<1x8x1xf32>,
    %c0_24 = arith.constant 0 : index
    %c0_25 = arith.constant 0 : index
    %c0_26 = arith.constant 0 : index
    %38 = vector.load %arg7[%c0_24, %c0_25, %c0_26] : memref<1x8x1xf32, #tpu.memory_space<vmem>>, vector<1x8x1xf32>
    %39 = vector.shape_cast %38 : vector<1x8x1xf32> to vector<8x1xf32>
    %cst_27 = arith.constant dense<0xFF800000> : vector<8xf32>
    %40 = vector.multi_reduction <maximumf>, %4, %cst_27 [1] : vector<8x256xf32> to vector<8xf32>
    %41 = vector.shape_cast %40 : vector<8xf32> to vector<8x1xf32>
    %42 = arith.maximumf %39, %41 : vector<8x1xf32>
    %43 = arith.subf %39, %42 : vector<8x1xf32>
    %44 = math.exp %43 : vector<8x1xf32>
    %45 = vector.broadcast %42 : vector<8x1xf32> to vector<8x256xf32>
    %46 = arith.subf %4, %45 : vector<8x256xf32>
    %47 = math.exp %46 : vector<8x256xf32>
    %c0_28 = arith.constant 0 : index
    %c0_29 = arith.constant 0 : index
    %c0_30 = arith.constant 0 : index
    %48 = vector.load %arg8[%c0_28, %c0_29, %c0_30] : memref<1x8x1xf32, #tpu.memory_space<vmem>>, vector<1x8x1xf32>
    %49 = vector.shape_cast %48 : vector<1x8x1xf32> to vector<8x1xf32>
    %50 = arith.mulf %44, %49 : vector<8x1xf32>
    %cst_31 = arith.constant dense<0.000000e+00> : vector<8xf32>
    %51 = vector.multi_reduction <add>, %47, %cst_31 [1] : vector<8x256xf32> to vector<8xf32>
    %52 = vector.shape_cast %51 : vector<8xf32> to vector<8x1xf32>
    %53 = arith.addf %50, %52 : vector<8x1xf32>
    %c0_32 = arith.constant 0 : index
    %c0_33 = arith.constant 0 : index
    %c0_34 = arith.constant 0 : index
    %54 = vector.load %arg8[%c0_32, %c0_33, %c0_34] : memref<1x8x1xf32, #tpu.memory_space<vmem>>, vector<1x8x1xf32>
    %55 = vector.shape_cast %54 : vector<1x8x1xf32> to vector<8x1xf32>
    %56 = vector.shape_cast %53 : vector<8x1xf32> to vector<1x8x1xf32>
    tpu.vector_store %arg8[%c0_32, %c0_33, %c0_34], %56 {strides = array<i32>} : memref<1x8x1xf32, #tpu.memory_space<vmem>>, vector<1x8x1xf32>,
    %c0_35 = arith.constant 0 : index
    %c0_36 = arith.constant 0 : index
    %c0_37 = arith.constant 0 : index
    %57 = vector.load %arg7[%c0_35, %c0_36, %c0_37] : memref<1x8x1xf32, #tpu.memory_space<vmem>>, vector<1x8x1xf32>
    %58 = vector.shape_cast %57 : vector<1x8x1xf32> to vector<8x1xf32>
    %59 = vector.shape_cast %42 : vector<8x1xf32> to vector<1x8x1xf32>
    tpu.vector_store %arg7[%c0_35, %c0_36, %c0_37], %59 {strides = array<i32>} : memref<1x8x1xf32, #tpu.memory_space<vmem>>, vector<1x8x1xf32>,
    return
  }
  func.func @transform_0(%arg0: i32, %arg1: i32) -> (i32, i32) {
    %c1_i32 = arith.constant 1 : i32
    %0 = arith.muli %arg0, %c1_i32 : i32
    %1 = arith.addi %0, %arg1 : i32
    %c0_i32 = arith.constant 0 : i32
    %2 = arith.minsi %1, %c0_i32 : i32
    %c0_i32_0 = arith.constant 0 : i32
    %c0_i32_1 = arith.constant 0 : i32
    return %c0_i32_0, %2 : i32, i32
  }
  func.func @transform_1(%arg0: i32, %arg1: i32) -> (i32, i32) {
    %c1_i32 = arith.constant 1 : i32
    %0 = arith.muli %arg0, %c1_i32 : i32
    %1 = arith.addi %0, %arg1 : i32
    %c0_i32 = arith.constant 0 : i32
    %2 = arith.minsi %1, %c0_i32 : i32
    %c0_i32_0 = arith.constant 0 : i32
    %c0_i32_1 = arith.constant 0 : i32
    return %c0_i32_0, %2 : i32, i32
  }
  func.func @transform_2(%arg0: i32, %arg1: i32) -> (i32, i32, i32) {
    %c0_i32 = arith.constant 0 : i32
    %c0_i32_0 = arith.constant 0 : i32
    %c0_i32_1 = arith.constant 0 : i32
    return %arg0, %c0_i32, %c0_i32_0 : i32, i32, i32
  }
  func.func @transform_3(%arg0: i32, %arg1: i32) -> (i32, i32, i32) {
    %c0_i32 = arith.constant 0 : i32
    %c0_i32_0 = arith.constant 0 : i32
    %c0_i32_1 = arith.constant 0 : i32
    return %arg0, %c0_i32, %c0_i32_0 : i32, i32, i32
  }
  func.func @transform_4(%arg0: i32, %arg1: i32) -> (i32, i32, i32) {
    %c0_i32 = arith.constant 0 : i32
    %c0_i32_0 = arith.constant 0 : i32
    %c0_i32_1 = arith.constant 0 : i32
    return %arg0, %c0_i32, %c0_i32_0 : i32, i32, i32
  }
  func.func @transform_5(%arg0: i32, %arg1: i32) -> (i32, i32, i32) {
    %c0_i32 = arith.constant 0 : i32
    %c0_i32_0 = arith.constant 0 : i32
    %c0_i32_1 = arith.constant 0 : i32
    return %arg0, %c0_i32, %c0_i32_0 : i32, i32, i32
  }
  func.func @transform_6(%arg0: i32, %arg1: i32) -> (i32, i32, i32) {
    %c0_i32 = arith.constant 0 : i32
    %c0_i32_0 = arith.constant 0 : i32
    %c0_i32_1 = arith.constant 0 : i32
    return %arg0, %c0_i32, %c0_i32_0 : i32, i32, i32
  }
}

</mosaic_0001>

<llo_original>
// kernel: criterion_kl2.1
$region0: #{criterion_kl2.1}
  #allocation0 [shape = 'u32[]', space=smem, size = 0x4, offset = 0x4, fixed_abs, tag = 'smem constant byte address 0x4 - core index']
  #allocation1 [shape = 'u32[144,128]{1,0:T(1,128)}', space=vmem, size = 0x12000, scoped, tag = 'internal scratch']
  %s0 = inlined_call_operand.vmem [shape: f32[8,256], index: 0, kind: input, shape index: {}]
  %s1 = inlined_call_operand.vmem [shape: f32[8,256], index: 1, kind: input, shape index: {}]
  %s2 = inlined_call_operand.vmem [shape: f32[1,8,1], index: 2, kind: output, shape index: {0}]
  %s3 = inlined_call_operand.vmem [shape: f32[1,8,1], index: 3, kind: output, shape index: {1}]
  %s4 = inlined_call_operand.vmem [shape: f32[1,8,1], index: 4, kind: output, shape index: {2}]
  %s5 = inlined_call_operand.vmem [shape: f32[1,8,1], index: 5, kind: output, shape index: {3}]
  %s6 = inlined_call_operand.vmem [shape: f32[1,8,1], index: 6, kind: output, shape index: {4}]
  %7 = xla_tuple %s2, %s3, %s4, %s5, %s6
  %s8 = sld [smem:[#allocation0]]
  $region54: #{criterion_kl2.1} parent=0
    _
  %s10 = ssub.s32 1, %s8
  %s11 = scalar_select 0, %s10, %s8
  // Predicated region
  $region2: #{criterion_kl2.1} parent=0 // pred_check
    _
  $region3: #{criterion_kl2.1} parent=0 // pred_check_branch
    %13 = sbr.rel (0) target = $region5
  $region4: #{criterion_kl2.1} parent=0 // pred_region
    %s14 = sadd.s32 0, 0
    %p15 = scmp.lt.s32.totalorder %s14, 0
    %s16 = scalar_select %p15, %s14, 0
    %s17 = smul.u32 2, %s16
    %p18 = scmp.lt.s32.totalorder %s17, 1
    %s19 = scalar_select %p18, %s17, 1
    %s20 = smul.addr %s19, 8
    %s21 = scalar_lea.vmem %s0, %s20
    %s22 = sadd.s32 0, 0
    %p23 = scmp.lt.s32.totalorder %s22, 0
    %s24 = scalar_select %p23, %s22, 0
    %s25 = smul.u32 2, %s24
  $region5: #{criterion_kl2.1} parent=0 // pred_fallthru
    _
  // Predicated region
  $region6: #{criterion_kl2.1} parent=0 // pred_check
    _
  $region7: #{criterion_kl2.1} parent=0 // pred_check_branch
    %27 = sbr.rel (0) target = $region9
  $region8: #{criterion_kl2.1} parent=0 // pred_region
    %s28 = sadd.s32 0, 0
    %p29 = scmp.lt.s32.totalorder %s28, 0
    %s30 = scalar_select %p29, %s28, 0
    %s31 = smul.u32 2, %s30
    %p32 = scmp.lt.s32.totalorder %s31, 1
    %s33 = scalar_select %p32, %s31, 1
    %s34 = smul.addr %s33, 8
    %s35 = scalar_lea.vmem %s1, %s34
    %s36 = sadd.s32 0, 0
    %p37 = scmp.lt.s32.totalorder %s36, 0
    %s38 = scalar_select %p37, %s36, 0
    %s39 = smul.u32 2, %s38
  $region9: #{criterion_kl2.1} parent=0 // pred_fallthru
    _
  %s40 = sadd.s32 0, 0
  %p41 = scmp.lt.s32.totalorder %s40, 0
  %s42 = scalar_select %p41, %s40, 0
  %s43 = smul.u32 2, %s42
  %p44 = scmp.lt.s32.totalorder %s43, 1
  %s45 = scalar_select %p44, %s43, 1
  %s46 = smul.addr %s45, 8
  %s47 = scalar_lea.vmem %s0, %s46
  %s48 = sadd.s32 0, 0
  %p49 = scmp.lt.s32.totalorder %s48, 0
  %s50 = scalar_select %p49, %s48, 0
  %s51 = smul.u32 2, %s50
  %p52 = scmp.lt.s32.totalorder %s51, 1
  %s53 = scalar_select %p52, %s51, 1
  %s54 = smul.addr %s53, 8
  %s55 = scalar_lea.vmem %s1, %s54
  %s56 = sadd.s32 0, 0
  %p57 = scmp.lt.s32.totalorder %s56, 0
  %s58 = scalar_select %p57, %s56, 0
  %s59 = smul.u32 2, %s58
  %p60 = scmp.lt.s32.totalorder %s59, 1
  %s61 = scalar_select %p60, %s59, 1
  %s62 = smul.addr %s61, 8
  %s63 = scalar_lea.vmem %s0, %s62
  %s64 = sadd.s32 0, 0
  %p65 = scmp.lt.s32.totalorder %s64, 0
  %s66 = scalar_select %p65, %s64, 0
  %s67 = smul.u32 2, %s66
  %s68 = sadd.s32 0, 0
  %p69 = scmp.lt.s32.totalorder %s68, 0
  %s70 = scalar_select %p69, %s68, 0
  %s71 = smul.u32 2, %s70
  %p72 = scmp.lt.s32.totalorder %s71, 1
  %s73 = scalar_select %p72, %s71, 1
  %s74 = smul.addr %s73, 8
  %s75 = scalar_lea.vmem %s1, %s74
  %s76 = sadd.s32 0, 0
  %p77 = scmp.lt.s32.totalorder %s76, 0
  %s78 = scalar_select %p77, %s76, 0
  %s79 = smul.u32 2, %s78
  %p80 = scmp.eq.s32.totalorder 0, 0
  // Predicated region
  $region10: #{criterion_kl2.1} parent=0 // pred_check
    %p81 = pneg %p80
  $region11: #{criterion_kl2.1} parent=0 // pred_check_branch
    %83 = sbr.rel (%p81) target = $region13
  $region12: #{criterion_kl2.1} parent=0 // pred_region
    %vm84 = vcmask 7168
    %85 = vst.msk [vmem:[%s2] sm:$0xff] %vm84, -inf
    %86 = vst.msk [vmem:[%s5] sm:$0xff] %vm84, -inf
    %87 = vst.msk [vmem:[%s3] sm:$0xff] %vm84, 0.0
    %88 = vst.msk [vmem:[%s6] sm:$0xff] %vm84, 0.0
    %89 = vst.msk [vmem:[%s4] sm:$0xff] %vm84, 0.0
  $region13: #{criterion_kl2.1} parent=0 // pred_fallthru
    _
  %v90 = vld [vmem:[%s63] sm:$0xff]
  %v91 = vld [vmem:[%s63 + $0x8] sm:$0xff]
  %v92 = vld [vmem:[%s75] sm:$0xff]
  %v93 = vld [vmem:[%s75 + $0x8] sm:$0xff]
  %v94 = vld [vmem:[%s2] sm:$0xff]
  %v95 = vmax.f32 %v90, %v91
  %96 = vmax.xlane.f32.xlu0 %v95
  %v97 = vpop.xlane.xlu0 %96
  %v98 = vmax.f32 %v94, %v97
  %v99 = vsub.f32 %v94, %v98
  %v100 = vmul.f32 %v99, 1.442695
  %v101 = vpow.pop %v100
  %103 = vset.pattern.permute.xlu0 0
  %104 = vperm.xlu0 %103, %v98
  %v105 = vpop.permute.xlu0 %104
  %v107 = vsub.f32 %v90, %v105
  %v108 = vsub.f32 %v91, %v105
  %v109 = vmul.f32 %v107, 1.442695
  %v110 = vpow.pop %v109
  %v111 = vmul.f32 %v108, 1.442695
  %v112 = vpow.pop %v111
  %v113 = vsub.f32 %v90, %v92
  %v114 = vsub.f32 %v91, %v93
  %v115 = vmul.f32 %v110, %v113
  %v116 = vmul.f32 %v112, %v114
  %v117 = vld [vmem:[%s3] sm:$0xff]
  %v118 = vmul.f32 %v101, %v117
  %v119 = vadd.f32 %v110, %v112
  %120 = vadd.xlane.f32.xlu0 %v119
  %v121 = vpop.xlane.xlu0 %120
  %v122 = vadd.f32 %v118, %v121
  %vm123 = vcmask 7168
  %124 = vst.msk [vmem:[%s3] sm:$0xff] %vm123, %v122
  %v125 = vld [vmem:[%s4] sm:$0xff]
  %v126 = vmul.f32 %v101, %v125
  %v127 = vadd.f32 %v115, %v116
  %128 = vadd.xlane.f32.xlu0 %v127
  %v129 = vpop.xlane.xlu0 %128
  %v130 = vadd.f32 %v126, %v129
  %131 = vst.msk [vmem:[%s4] sm:$0xff] %vm123, %v130
  %132 = vst.msk [vmem:[%s2] sm:$0xff] %vm123, %v98
  %v133 = vld [vmem:[%s5] sm:$0xff]
  %v134 = vmax.f32 %v92, %v93
  %135 = vmax.xlane.f32.xlu0 %v134
  %v136 = vpop.xlane.xlu0 %135
  %v137 = vmax.f32 %v133, %v136
  %v138 = vsub.f32 %v133, %v137
  %v139 = vmul.f32 %v138, 1.442695
  %v140 = vpow.pop %v139
  %142 = vset.pattern.permute.xlu0 0
  %143 = vperm.xlu0 %142, %v137
  %v144 = vpop.permute.xlu0 %143
  %v146 = vsub.f32 %v92, %v144
  %v147 = vsub.f32 %v93, %v144
  %v148 = vmul.f32 %v146, 1.442695
  %v149 = vpow.pop %v148
  %v150 = vmul.f32 %v147, 1.442695
  %v151 = vpow.pop %v150
  %v152 = vld [vmem:[%s6] sm:$0xff]
  %v153 = vmul.f32 %v140, %v152
  %v154 = vadd.f32 %v149, %v151
  %155 = vadd.xlane.f32.xlu0 %v154
  %v156 = vpop.xlane.xlu0 %155
  %v157 = vadd.f32 %v153, %v156
  %158 = vst.msk [vmem:[%s6] sm:$0xff] %vm123, %v157
  %159 = vst.msk [vmem:[%s5] sm:$0xff] %vm123, %v137
  // Predicated region
  $region14: #{criterion_kl2.1} parent=0 // pred_check
    _
  $region15: #{criterion_kl2.1} parent=0 // pred_check_branch
    %161 = sbr.rel (0) target = $region17
  $region16: #{criterion_kl2.1} parent=0 // pred_region
    _
  $region17: #{criterion_kl2.1} parent=0 // pred_fallthru
    _
  // Predicated region
  $region18: #{criterion_kl2.1} parent=0 // pred_check
    _
  $region19: #{criterion_kl2.1} parent=0 // pred_check_branch
    %163 = sbr.rel (0) target = $region21
  $region20: #{criterion_kl2.1} parent=0 // pred_region
    _
  $region21: #{criterion_kl2.1} parent=0 // pred_fallthru
    _
  // Predicated region
  $region22: #{criterion_kl2.1} parent=0 // pred_check
    _
  $region23: #{criterion_kl2.1} parent=0 // pred_check_branch
    %165 = sbr.rel (0) target = $region25
  $region24: #{criterion_kl2.1} parent=0 // pred_region
    _
  $region25: #{criterion_kl2.1} parent=0 // pred_fallthru
    _
  // Predicated region
  $region26: #{criterion_kl2.1} parent=0 // pred_check
    _
  $region27: #{criterion_kl2.1} parent=0 // pred_check_branch
    %167 = sbr.rel (0) target = $region29
  $region28: #{criterion_kl2.1} parent=0 // pred_region
    _
  $region29: #{criterion_kl2.1} parent=0 // pred_fallthru
    _
  // Predicated region
  $region30: #{criterion_kl2.1} parent=0 // pred_check
    _
  $region31: #{criterion_kl2.1} parent=0 // pred_check_branch
    %169 = sbr.rel (0) target = $region33
  $region32: #{criterion_kl2.1} parent=0 // pred_region
    _
  $region33: #{criterion_kl2.1} parent=0 // pred_fallthru
    _
  // Predicated region
  $region34: #{criterion_kl2.1} parent=0 // pred_check
    _
  $region35: #{criterion_kl2.1} parent=0 // pred_check_branch
    %171 = sbr.rel (0) target = $region37
  $region36: #{criterion_kl2.1} parent=0 // pred_region
    _
  $region37: #{criterion_kl2.1} parent=0 // pred_fallthru
    _
  // Predicated region
  $region38: #{criterion_kl2.1} parent=0 // pred_check
    _
  $region39: #{criterion_kl2.1} parent=0 // pred_check_branch
    %173 = sbr.rel (0) target = $region41
  $region40: #{criterion_kl2.1} parent=0 // pred_region
    _
  $region41: #{criterion_kl2.1} parent=0 // pred_fallthru
    _
  // Predicated region
  $region42: #{criterion_kl2.1} parent=0 // pred_check
    _
  $region43: #{criterion_kl2.1} parent=0 // pred_check_branch
    %175 = sbr.rel (0) target = $region45
  $region44: #{criterion_kl2.1} parent=0 // pred_region
    _
  $region45: #{criterion_kl2.1} parent=0 // pred_fallthru
    _
  // Predicated region
  $region46: #{criterion_kl2.1} parent=0 // pred_check
    _
  $region47: #{criterion_kl2.1} parent=0 // pred_check_branch
    %177 = sbr.rel (0) target = $region49
  $region48: #{criterion_kl2.1} parent=0 // pred_region
    _
  $region49: #{criterion_kl2.1} parent=0 // pred_fallthru
    _
  // Predicated region
  $region50: #{criterion_kl2.1} parent=0 // pred_check
    _
  $region51: #{criterion_kl2.1} parent=0 // pred_check_branch
    %179 = sbr.rel (0) target = $region53
  $region52: #{criterion_kl2.1} parent=0 // pred_region
    _
  $region53: #{criterion_kl2.1} parent=0 // pred_fallthru
    _

</llo_original>
